<compile_context>
chip_gen: v6e
topology: v6e:2x2x1
jax: 0.10.0
libtpu: 0.0.40
codegen_flags: <defaults>
</compile_context>

<pallas_src>
import functools

import jax
import jax.numpy as jnp
from jax.experimental import pallas as pl
from jax.experimental.pallas import tpu as pltpu

NEG_SLOPE = 0.1      # FCNNBlock default negative_slope
BN_EPS = 1e-5        # torch.nn.BatchNorm1d default eps


def _leaky_relu(v):
    return jnp.where(v >= 0, v, NEG_SLOPE * v)


def autoencoder_kernel(
    x_ref,                                   # (bt, D_in)
    # --- encoder params (bias already folded into BN shift) ---
    e_w0, e_s0, e_c0,                        # (D_in, He), (1, He), (1, He)
    e_wh, e_sh, e_ch,                        # (Le, He, He), (Le, 1, He), (Le, 1, He)
    e_wo, e_bo,                              # (He, latent), (1, latent)
    # --- decoder params ---
    d_w0, d_s0, d_c0,                        # (latent, Hd), (1, Hd), (1, Hd)
    d_wh, d_sh, d_ch,                        # (Ld, Hd, Hd), (Ld, 1, Hd), (Ld, 1, Hd)
    d_wo, d_bo,                              # (Hd, D_out), (1, D_out)
    # --- outputs ---
    l_ref,                                   # (bt, latent)
    y_ref,                                   # (bt, D_out)
    *, L_enc, L_dec,
):
    def fcnn(h, w0, s0, c0, wh, sh, ch, wo, bo, n_layers):
        # embed: Linear -> BN(eval, affine) -> LeakyReLU   (bias folded into c0)
        h = jnp.dot(h, w0[...], preferred_element_type=jnp.float32)
        h = _leaky_relu(h * s0[...] + c0[...])
        # hidden stack (static unroll over the fixed layer count)
        for l in range(n_layers):
            h = jnp.dot(h, wh[l], preferred_element_type=jnp.float32)
            h = _leaky_relu(h * sh[l] + ch[l])
        # output projection (plain Linear, keeps its bias)
        return jnp.dot(h, wo[...], preferred_element_type=jnp.float32) + bo[...]

    x = x_ref[...]
    lat = fcnn(x, e_w0, e_s0, e_c0, e_wh, e_sh, e_ch, e_wo, e_bo, L_enc)
    l_ref[...] = lat

    dec = fcnn(lat, d_w0, d_s0, d_c0, d_wh, d_sh, d_ch, d_wo, d_bo, L_dec)
    y_ref[...] = jax.nn.sigmoid(dec)


def _rep_spec(arr):
    """Full-array block, replicated across the batch grid (stays VMEM-resident)."""
    nd = arr.ndim
    return pl.BlockSpec(arr.shape, lambda i, _nd=nd: (0,) * _nd)


def _fold_block(p):
    """Fold each Linear bias into the eval-mode BN shift: (Wx+b)*s+beta = (Wx)*s + (b*s+beta)."""
    return {
        "w0": p["w0"],
        "s0": p["bn0_s"],
        "c0": p["bn0_b"] + p["b0"] * p["bn0_s"],
        "wh": p["wh"],
        "sh": p["bnh_s"],
        "ch": p["bnh_b"] + p["bh"] * p["bnh_s"],
        "wo": p["wo"],
        "bo": p["bo"],
    }


def autoencoder_forward(x, params, *, block_b=None):
    """x: (B, D_in) float32. Returns (l: (B, latent), y: (B, D_out))."""
    B, D_in = x.shape
    enc = _fold_block(params["encoder"])
    dec = _fold_block(params["decoder"])
    latent = enc["wo"].shape[1]
    D_out = dec["wo"].shape[1]
    L_enc = enc["wh"].shape[0]
    L_dec = dec["wh"].shape[0]

    if block_b is None:
        # Biggest tile that comfortably fits VMEM; split only for large batches
        # (multiple grid steps -> pipelining + v7x megacore sharding).
        block_b = B
        if B > 512:
            for cand in (512, 256, 128, 64, 32, 16, 8):
                if B % cand == 0:
                    block_b = cand
                    break
    assert B % block_b == 0 and (block_b == B or block_b % 8 == 0), (B, block_b)
    grid = (B // block_b,)

    param_list = [
        enc["w0"], enc["s0"], enc["c0"],
        enc["wh"], enc["sh"], enc["ch"],
        enc["wo"], enc["bo"],
        dec["w0"], dec["s0"], dec["c0"],
        dec["wh"], dec["sh"], dec["ch"],
        dec["wo"], dec["bo"],
    ]

    in_specs = [pl.BlockSpec((block_b, D_in), lambda i: (i, 0))]
    in_specs += [_rep_spec(p) for p in param_list]
    out_specs = (
        pl.BlockSpec((block_b, latent), lambda i: (i, 0)),
        pl.BlockSpec((block_b, D_out), lambda i: (i, 0)),
    )

    kernel = functools.partial(autoencoder_kernel, L_enc=L_enc, L_dec=L_dec)

    l, y = pl.pallas_call(
        kernel,
        grid=grid,
        out_shape=(
            jax.ShapeDtypeStruct((B, latent), jnp.float32),
            jax.ShapeDtypeStruct((B, D_out), jnp.float32),
        ),
        in_specs=in_specs,
        out_specs=out_specs,
        compiler_params=pltpu.CompilerParams(
            dimension_semantics=("parallel",),   # batch tiles -> both TCs on v7x
            vmem_limit_bytes=64 * 1024 * 1024,
        ),
    )(x, *param_list)
    return l, y


def init_fcnn_params(key, input_dim, output_dim, hidden_dim, hidden_layers):
    """FCNNBlock params in eval mode; BatchNorm expressed as per-feature scale/shift."""
    assert hidden_layers >= 1
    H, L = hidden_dim, hidden_layers
    ks = jax.random.split(key, 6 + 6 * L + 4)
    scale = 0.2

    def u(k, shape, lo=-scale, hi=scale):
        return jax.random.uniform(k, shape, jnp.float32, lo, hi)

    def bn_affine(k, dim):
        kg, kb, km, kv = jax.random.split(k, 4)
        gamma = 1.0 + u(kg, (1, dim))
        beta = u(kb, (1, dim))
        mean = u(km, (1, dim))
        var = jax.random.uniform(kv, (1, dim), jnp.float32, 0.5, 1.5)
        s = gamma / jnp.sqrt(var + BN_EPS)
        b = beta - mean * s
        return s, b

    p = {
        "w0": u(ks[0], (input_dim, H)),
        "b0": u(ks[1], (1, H)),
        "wo": u(ks[2], (H, output_dim)),
        "bo": u(ks[3], (1, output_dim)),
    }
    p["bn0_s"], p["bn0_b"] = bn_affine(ks[4], H)

    wh, bh, bnh_s, bnh_b = [], [], [], []
    for l in range(L):
        kb = 6 + 6 * l
        wh.append(u(ks[kb + 0], (H, H)))
        bh.append(u(ks[kb + 1], (1, H)))
        s, b = bn_affine(ks[kb + 2], H)
        bnh_s.append(s)
        bnh_b.append(b)
    p["wh"] = jnp.stack(wh)        # (L, H, H)
    p["bh"] = jnp.stack(bh)        # (L, 1, H)
    p["bnh_s"] = jnp.stack(bnh_s)  # (L, 1, H)
    p["bnh_b"] = jnp.stack(bnh_b)  # (L, 1, H)
    return p


def init_params(key, input_dim, latent_dim, output_dim,
                enc_hidden_dim, enc_hidden_layers,
                dec_hidden_dim, dec_hidden_layers):
    k_e, k_d = jax.random.split(key, 2)
    return {
        "encoder": init_fcnn_params(k_e, input_dim, latent_dim,
                                    enc_hidden_dim, enc_hidden_layers),
        "decoder": init_fcnn_params(k_d, latent_dim, output_dim,
                                    dec_hidden_dim, dec_hidden_layers),
    }


def _fcnn_ref(x, p):
    # Un-folded reference (exact torch eval-mode ordering).
    h = x @ p["w0"] + p["b0"]
    h = _leaky_relu(h * p["bn0_s"] + p["bn0_b"])
    for l in range(p["wh"].shape[0]):
        h = h @ p["wh"][l] + p["bh"][l]
        h = _leaky_relu(h * p["bnh_s"][l] + p["bnh_b"][l])
    return h @ p["wo"] + p["bo"]


def reference_forward(x, params):
    lat = _fcnn_ref(x, params["encoder"])
    y = jax.nn.sigmoid(_fcnn_ref(lat, params["decoder"]))
    return lat, y


if __name__ == "__main__":
    B = 16
    INPUT_DIM = 16
    LATENT_DIM = 8
    OUTPUT_DIM = INPUT_DIM       # output_dim=None -> defaults to input_dim
    ENC_HIDDEN_DIM = 32
    ENC_HIDDEN_LAYERS = 2
    DEC_HIDDEN_DIM = 32
    DEC_HIDDEN_LAYERS = 2

    key = jax.random.PRNGKey(0)
    k_x, k_p = jax.random.split(key, 2)
    x = jax.random.normal(k_x, (B, INPUT_DIM), jnp.float32)
    params = init_params(k_p, INPUT_DIM, LATENT_DIM, OUTPUT_DIM,
                         ENC_HIDDEN_DIM, ENC_HIDDEN_LAYERS,
                         DEC_HIDDEN_DIM, DEC_HIDDEN_LAYERS)

    fwd = jax.jit(autoencoder_forward)
    l_out, y_out = fwd(x, params)
    l_out = jax.block_until_ready(l_out)
    y_out = jax.block_until_ready(y_out)

    l_ref, y_ref = reference_forward(x, params)
    assert l_out.shape == (B, LATENT_DIM), l_out.shape
    assert y_out.shape == (B, OUTPUT_DIM), y_out.shape
    assert jnp.allclose(l_out, l_ref, atol=1e-5, rtol=1e-5), (
        float(jnp.max(jnp.abs(l_out - l_ref))))
    assert jnp.allclose(y_out, y_ref, atol=1e-5, rtol=1e-5), (
        float(jnp.max(jnp.abs(y_out - y_ref))))
    print("KERNEL_OK")
</pallas_src>

<mosaic_0001>
module attributes {stable_mosaic.version = 11 : i64} {
  func.func @autoencoder_kernel(%arg0: i32, %arg1: memref<16x16xf32, #tpu.memory_space<vmem>>, %arg2: memref<16x32xf32, #tpu.memory_space<vmem>>, %arg3: memref<1x32xf32, #tpu.memory_space<vmem>>, %arg4: memref<1x32xf32, #tpu.memory_space<vmem>>, %arg5: memref<2x32x32xf32, #tpu.memory_space<vmem>>, %arg6: memref<2x1x32xf32, #tpu.memory_space<vmem>>, %arg7: memref<2x1x32xf32, #tpu.memory_space<vmem>>, %arg8: memref<32x8xf32, #tpu.memory_space<vmem>>, %arg9: memref<1x8xf32, #tpu.memory_space<vmem>>, %arg10: memref<8x32xf32, #tpu.memory_space<vmem>>, %arg11: memref<1x32xf32, #tpu.memory_space<vmem>>, %arg12: memref<1x32xf32, #tpu.memory_space<vmem>>, %arg13: memref<2x32x32xf32, #tpu.memory_space<vmem>>, %arg14: memref<2x1x32xf32, #tpu.memory_space<vmem>>, %arg15: memref<2x1x32xf32, #tpu.memory_space<vmem>>, %arg16: memref<32x16xf32, #tpu.memory_space<vmem>>, %arg17: memref<1x16xf32, #tpu.memory_space<vmem>>, %arg18: memref<16x8xf32, #tpu.memory_space<vmem>>, %arg19: memref<16x16xf32, #tpu.memory_space<vmem>>) attributes {dimension_semantics = [#tpu.dimension_semantics<parallel>], iteration_bounds = array<i64: 1>, scalar_prefetch = 0 : i64, scratch_operands = 0 : i64, tpu.core_type = #tpu.core_type<tc>, window_params = [{transform_indices = @transform_0, window_bounds = array<i64: 16, 16>}, {pipeline_mode = #tpu.pipeline_mode<synchronous>, transform_indices = @transform_1, window_bounds = array<i64: 16, 32>}, {pipeline_mode = #tpu.pipeline_mode<synchronous>, transform_indices = @transform_2, window_bounds = array<i64: 1, 32>}, {pipeline_mode = #tpu.pipeline_mode<synchronous>, transform_indices = @transform_3, window_bounds = array<i64: 1, 32>}, {pipeline_mode = #tpu.pipeline_mode<synchronous>, transform_indices = @transform_4, window_bounds = array<i64: 2, 32, 32>}, {pipeline_mode = #tpu.pipeline_mode<synchronous>, transform_indices = @transform_5, window_bounds = array<i64: 2, 1, 32>}, {pipeline_mode = #tpu.pipeline_mode<synchronous>, transform_indices = @transform_6, window_bounds = array<i64: 2, 1, 32>}, {pipeline_mode = #tpu.pipeline_mode<synchronous>, transform_indices = @transform_7, window_bounds = array<i64: 32, 8>}, {pipeline_mode = #tpu.pipeline_mode<synchronous>, transform_indices = @transform_8, window_bounds = array<i64: 1, 8>}, {pipeline_mode = #tpu.pipeline_mode<synchronous>, transform_indices = @transform_9, window_bounds = array<i64: 8, 32>}, {pipeline_mode = #tpu.pipeline_mode<synchronous>, transform_indices = @transform_10, window_bounds = array<i64: 1, 32>}, {pipeline_mode = #tpu.pipeline_mode<synchronous>, transform_indices = @transform_11, window_bounds = array<i64: 1, 32>}, {pipeline_mode = #tpu.pipeline_mode<synchronous>, transform_indices = @transform_12, window_bounds = array<i64: 2, 32, 32>}, {pipeline_mode = #tpu.pipeline_mode<synchronous>, transform_indices = @transform_13, window_bounds = array<i64: 2, 1, 32>}, {pipeline_mode = #tpu.pipeline_mode<synchronous>, transform_indices = @transform_14, window_bounds = array<i64: 2, 1, 32>}, {pipeline_mode = #tpu.pipeline_mode<synchronous>, transform_indices = @transform_15, window_bounds = array<i64: 32, 16>}, {pipeline_mode = #tpu.pipeline_mode<synchronous>, transform_indices = @transform_16, window_bounds = array<i64: 1, 16>}, {transform_indices = @transform_17, window_bounds = array<i64: 16, 8>}, {transform_indices = @transform_18, window_bounds = array<i64: 16, 16>}]} {
    %c0 = arith.constant 0 : index
    %c0_0 = arith.constant 0 : index
    %0 = vector.load %arg1[%c0, %c0_0] : memref<16x16xf32, #tpu.memory_space<vmem>>, vector<16x16xf32>
    %c0_1 = arith.constant 0 : index
    %c0_2 = arith.constant 0 : index
    %1 = vector.load %arg2[%c0_1, %c0_2] : memref<16x32xf32, #tpu.memory_space<vmem>>, vector<16x32xf32>
    %cst = arith.constant dense<0.000000e+00> : vector<16x32xf32>
    %2 = tpu.matmul %0, %1, %cst {dimension_numbers = #tpu.dot_dimension_numbers<[1], [0], [0], [1], [0, 0, 1, 1], [], []>} : vector<16x16xf32>, vector<16x32xf32>, vector<16x32xf32> -> vector<16x32xf32>
    %c0_3 = arith.constant 0 : index
    %c0_4 = arith.constant 0 : index
    %3 = vector.load %arg3[%c0_3, %c0_4] : memref<1x32xf32, #tpu.memory_space<vmem>>, vector<1x32xf32>
    %4 = vector.broadcast %3 : vector<1x32xf32> to vector<16x32xf32>
    %5 = arith.mulf %2, %4 : vector<16x32xf32>
    %c0_5 = arith.constant 0 : index
    %c0_6 = arith.constant 0 : index
    %6 = vector.load %arg4[%c0_5, %c0_6] : memref<1x32xf32, #tpu.memory_space<vmem>>, vector<1x32xf32>
    %7 = vector.broadcast %6 : vector<1x32xf32> to vector<16x32xf32>
    %8 = arith.addf %5, %7 : vector<16x32xf32>
    %cst_7 = arith.constant 0.000000e+00 : f32
    %9 = vector.broadcast %cst_7 : f32 to vector<16x32xf32>
    %10 = arith.cmpf oge, %8, %9 : vector<16x32xf32>
    %cst_8 = arith.constant 1.000000e-01 : f32
    %11 = vector.broadcast %cst_8 : f32 to vector<16x32xf32>
    %12 = arith.mulf %11, %8 : vector<16x32xf32>
    %13 = arith.select %10, %8, %12 : vector<16x32xi1>, vector<16x32xf32>
    %c0_9 = arith.constant 0 : index
    %c0_10 = arith.constant 0 : index
    %c0_11 = arith.constant 0 : index
    %14 = vector.load %arg5[%c0_9, %c0_10, %c0_11] : memref<2x32x32xf32, #tpu.memory_space<vmem>>, vector<1x32x32xf32>
    %15 = vector.shape_cast %14 : vector<1x32x32xf32> to vector<32x32xf32>
    %cst_12 = arith.constant dense<0.000000e+00> : vector<16x32xf32>
    %16 = tpu.matmul %13, %15, %cst_12 {dimension_numbers = #tpu.dot_dimension_numbers<[1], [0], [0], [1], [0, 0, 1, 1], [], []>} : vector<16x32xf32>, vector<32x32xf32>, vector<16x32xf32> -> vector<16x32xf32>
    %c0_13 = arith.constant 0 : index
    %c0_14 = arith.constant 0 : index
    %c0_15 = arith.constant 0 : index
    %17 = vector.load %arg6[%c0_13, %c0_14, %c0_15] : memref<2x1x32xf32, #tpu.memory_space<vmem>>, vector<1x1x32xf32>
    %18 = vector.shape_cast %17 : vector<1x1x32xf32> to vector<1x32xf32>
    %19 = vector.broadcast %18 : vector<1x32xf32> to vector<16x32xf32>
    %20 = arith.mulf %16, %19 : vector<16x32xf32>
    %c0_16 = arith.constant 0 : index
    %c0_17 = arith.constant 0 : index
    %c0_18 = arith.constant 0 : index
    %21 = vector.load %arg7[%c0_16, %c0_17, %c0_18] : memref<2x1x32xf32, #tpu.memory_space<vmem>>, vector<1x1x32xf32>
    %22 = vector.shape_cast %21 : vector<1x1x32xf32> to vector<1x32xf32>
    %23 = vector.broadcast %22 : vector<1x32xf32> to vector<16x32xf32>
    %24 = arith.addf %20, %23 : vector<16x32xf32>
    %cst_19 = arith.constant 0.000000e+00 : f32
    %25 = vector.broadcast %cst_19 : f32 to vector<16x32xf32>
    %26 = arith.cmpf oge, %24, %25 : vector<16x32xf32>
    %cst_20 = arith.constant 1.000000e-01 : f32
    %27 = vector.broadcast %cst_20 : f32 to vector<16x32xf32>
    %28 = arith.mulf %27, %24 : vector<16x32xf32>
    %29 = arith.select %26, %24, %28 : vector<16x32xi1>, vector<16x32xf32>
    %c1 = arith.constant 1 : index
    %c0_21 = arith.constant 0 : index
    %c0_22 = arith.constant 0 : index
    %30 = vector.load %arg5[%c1, %c0_21, %c0_22] : memref<2x32x32xf32, #tpu.memory_space<vmem>>, vector<1x32x32xf32>
    %31 = vector.shape_cast %30 : vector<1x32x32xf32> to vector<32x32xf32>
    %cst_23 = arith.constant dense<0.000000e+00> : vector<16x32xf32>
    %32 = tpu.matmul %29, %31, %cst_23 {dimension_numbers = #tpu.dot_dimension_numbers<[1], [0], [0], [1], [0, 0, 1, 1], [], []>} : vector<16x32xf32>, vector<32x32xf32>, vector<16x32xf32> -> vector<16x32xf32>
    %c1_24 = arith.constant 1 : index
    %c0_25 = arith.constant 0 : index
    %c0_26 = arith.constant 0 : index
    %33 = vector.load %arg6[%c1_24, %c0_25, %c0_26] : memref<2x1x32xf32, #tpu.memory_space<vmem>>, vector<1x1x32xf32>
    %34 = vector.shape_cast %33 : vector<1x1x32xf32> to vector<1x32xf32>
    %35 = vector.broadcast %34 : vector<1x32xf32> to vector<16x32xf32>
    %36 = arith.mulf %32, %35 : vector<16x32xf32>
    %c1_27 = arith.constant 1 : index
    %c0_28 = arith.constant 0 : index
    %c0_29 = arith.constant 0 : index
    %37 = vector.load %arg7[%c1_27, %c0_28, %c0_29] : memref<2x1x32xf32, #tpu.memory_space<vmem>>, vector<1x1x32xf32>
    %38 = vector.shape_cast %37 : vector<1x1x32xf32> to vector<1x32xf32>
    %39 = vector.broadcast %38 : vector<1x32xf32> to vector<16x32xf32>
    %40 = arith.addf %36, %39 : vector<16x32xf32>
    %cst_30 = arith.constant 0.000000e+00 : f32
    %41 = vector.broadcast %cst_30 : f32 to vector<16x32xf32>
    %42 = arith.cmpf oge, %40, %41 : vector<16x32xf32>
    %cst_31 = arith.constant 1.000000e-01 : f32
    %43 = vector.broadcast %cst_31 : f32 to vector<16x32xf32>
    %44 = arith.mulf %43, %40 : vector<16x32xf32>
    %45 = arith.select %42, %40, %44 : vector<16x32xi1>, vector<16x32xf32>
    %c0_32 = arith.constant 0 : index
    %c0_33 = arith.constant 0 : index
    %46 = vector.load %arg8[%c0_32, %c0_33] : memref<32x8xf32, #tpu.memory_space<vmem>>, vector<32x8xf32>
    %cst_34 = arith.constant dense<0.000000e+00> : vector<16x8xf32>
    %47 = tpu.matmul %45, %46, %cst_34 {dimension_numbers = #tpu.dot_dimension_numbers<[1], [0], [0], [1], [0, 0, 1, 1], [], []>} : vector<16x32xf32>, vector<32x8xf32>, vector<16x8xf32> -> vector<16x8xf32>
    %c0_35 = arith.constant 0 : index
    %c0_36 = arith.constant 0 : index
    %48 = vector.load %arg9[%c0_35, %c0_36] : memref<1x8xf32, #tpu.memory_space<vmem>>, vector<1x8xf32>
    %49 = vector.broadcast %48 : vector<1x8xf32> to vector<16x8xf32>
    %50 = arith.addf %47, %49 : vector<16x8xf32>
    %c0_37 = arith.constant 0 : index
    %c0_38 = arith.constant 0 : index
    %51 = vector.load %arg18[%c0_37, %c0_38] : memref<16x8xf32, #tpu.memory_space<vmem>>, vector<16x8xf32>
    tpu.vector_store %arg18[%c0_37, %c0_38], %50 {strides = array<i32>} : memref<16x8xf32, #tpu.memory_space<vmem>>, vector<16x8xf32>,
    %c0_39 = arith.constant 0 : index
    %c0_40 = arith.constant 0 : index
    %52 = vector.load %arg10[%c0_39, %c0_40] : memref<8x32xf32, #tpu.memory_space<vmem>>, vector<8x32xf32>
    %cst_41 = arith.constant dense<0.000000e+00> : vector<16x32xf32>
    %53 = tpu.matmul %50, %52, %cst_41 {dimension_numbers = #tpu.dot_dimension_numbers<[1], [0], [0], [1], [0, 0, 1, 1], [], []>} : vector<16x8xf32>, vector<8x32xf32>, vector<16x32xf32> -> vector<16x32xf32>
    %c0_42 = arith.constant 0 : index
    %c0_43 = arith.constant 0 : index
    %54 = vector.load %arg11[%c0_42, %c0_43] : memref<1x32xf32, #tpu.memory_space<vmem>>, vector<1x32xf32>
    %55 = vector.broadcast %54 : vector<1x32xf32> to vector<16x32xf32>
    %56 = arith.mulf %53, %55 : vector<16x32xf32>
    %c0_44 = arith.constant 0 : index
    %c0_45 = arith.constant 0 : index
    %57 = vector.load %arg12[%c0_44, %c0_45] : memref<1x32xf32, #tpu.memory_space<vmem>>, vector<1x32xf32>
    %58 = vector.broadcast %57 : vector<1x32xf32> to vector<16x32xf32>
    %59 = arith.addf %56, %58 : vector<16x32xf32>
    %cst_46 = arith.constant 0.000000e+00 : f32
    %60 = vector.broadcast %cst_46 : f32 to vector<16x32xf32>
    %61 = arith.cmpf oge, %59, %60 : vector<16x32xf32>
    %cst_47 = arith.constant 1.000000e-01 : f32
    %62 = vector.broadcast %cst_47 : f32 to vector<16x32xf32>
    %63 = arith.mulf %62, %59 : vector<16x32xf32>
    %64 = arith.select %61, %59, %63 : vector<16x32xi1>, vector<16x32xf32>
    %c0_48 = arith.constant 0 : index
    %c0_49 = arith.constant 0 : index
    %c0_50 = arith.constant 0 : index
    %65 = vector.load %arg13[%c0_48, %c0_49, %c0_50] : memref<2x32x32xf32, #tpu.memory_space<vmem>>, vector<1x32x32xf32>
    %66 = vector.shape_cast %65 : vector<1x32x32xf32> to vector<32x32xf32>
    %cst_51 = arith.constant dense<0.000000e+00> : vector<16x32xf32>
    %67 = tpu.matmul %64, %66, %cst_51 {dimension_numbers = #tpu.dot_dimension_numbers<[1], [0], [0], [1], [0, 0, 1, 1], [], []>} : vector<16x32xf32>, vector<32x32xf32>, vector<16x32xf32> -> vector<16x32xf32>
    %c0_52 = arith.constant 0 : index
    %c0_53 = arith.constant 0 : index
    %c0_54 = arith.constant 0 : index
    %68 = vector.load %arg14[%c0_52, %c0_53, %c0_54] : memref<2x1x32xf32, #tpu.memory_space<vmem>>, vector<1x1x32xf32>
    %69 = vector.shape_cast %68 : vector<1x1x32xf32> to vector<1x32xf32>
    %70 = vector.broadcast %69 : vector<1x32xf32> to vector<16x32xf32>
    %71 = arith.mulf %67, %70 : vector<16x32xf32>
    %c0_55 = arith.constant 0 : index
    %c0_56 = arith.constant 0 : index
    %c0_57 = arith.constant 0 : index
    %72 = vector.load %arg15[%c0_55, %c0_56, %c0_57] : memref<2x1x32xf32, #tpu.memory_space<vmem>>, vector<1x1x32xf32>
    %73 = vector.shape_cast %72 : vector<1x1x32xf32> to vector<1x32xf32>
    %74 = vector.broadcast %73 : vector<1x32xf32> to vector<16x32xf32>
    %75 = arith.addf %71, %74 : vector<16x32xf32>
    %cst_58 = arith.constant 0.000000e+00 : f32
    %76 = vector.broadcast %cst_58 : f32 to vector<16x32xf32>
    %77 = arith.cmpf oge, %75, %76 : vector<16x32xf32>
    %cst_59 = arith.constant 1.000000e-01 : f32
    %78 = vector.broadcast %cst_59 : f32 to vector<16x32xf32>
    %79 = arith.mulf %78, %75 : vector<16x32xf32>
    %80 = arith.select %77, %75, %79 : vector<16x32xi1>, vector<16x32xf32>
    %c1_60 = arith.constant 1 : index
    %c0_61 = arith.constant 0 : index
    %c0_62 = arith.constant 0 : index
    %81 = vector.load %arg13[%c1_60, %c0_61, %c0_62] : memref<2x32x32xf32, #tpu.memory_space<vmem>>, vector<1x32x32xf32>
    %82 = vector.shape_cast %81 : vector<1x32x32xf32> to vector<32x32xf32>
    %cst_63 = arith.constant dense<0.000000e+00> : vector<16x32xf32>
    %83 = tpu.matmul %80, %82, %cst_63 {dimension_numbers = #tpu.dot_dimension_numbers<[1], [0], [0], [1], [0, 0, 1, 1], [], []>} : vector<16x32xf32>, vector<32x32xf32>, vector<16x32xf32> -> vector<16x32xf32>
    %c1_64 = arith.constant 1 : index
    %c0_65 = arith.constant 0 : index
    %c0_66 = arith.constant 0 : index
    %84 = vector.load %arg14[%c1_64, %c0_65, %c0_66] : memref<2x1x32xf32, #tpu.memory_space<vmem>>, vector<1x1x32xf32>
    %85 = vector.shape_cast %84 : vector<1x1x32xf32> to vector<1x32xf32>
    %86 = vector.broadcast %85 : vector<1x32xf32> to vector<16x32xf32>
    %87 = arith.mulf %83, %86 : vector<16x32xf32>
    %c1_67 = arith.constant 1 : index
    %c0_68 = arith.constant 0 : index
    %c0_69 = arith.constant 0 : index
    %88 = vector.load %arg15[%c1_67, %c0_68, %c0_69] : memref<2x1x32xf32, #tpu.memory_space<vmem>>, vector<1x1x32xf32>
    %89 = vector.shape_cast %88 : vector<1x1x32xf32> to vector<1x32xf32>
    %90 = vector.broadcast %89 : vector<1x32xf32> to vector<16x32xf32>
    %91 = arith.addf %87, %90 : vector<16x32xf32>
    %cst_70 = arith.constant 0.000000e+00 : f32
    %92 = vector.broadcast %cst_70 : f32 to vector<16x32xf32>
    %93 = arith.cmpf oge, %91, %92 : vector<16x32xf32>
    %cst_71 = arith.constant 1.000000e-01 : f32
    %94 = vector.broadcast %cst_71 : f32 to vector<16x32xf32>
    %95 = arith.mulf %94, %91 : vector<16x32xf32>
    %96 = arith.select %93, %91, %95 : vector<16x32xi1>, vector<16x32xf32>
    %c0_72 = arith.constant 0 : index
    %c0_73 = arith.constant 0 : index
    %97 = vector.load %arg16[%c0_72, %c0_73] : memref<32x16xf32, #tpu.memory_space<vmem>>, vector<32x16xf32>
    %cst_74 = arith.constant dense<0.000000e+00> : vector<16x16xf32>
    %98 = tpu.matmul %96, %97, %cst_74 {dimension_numbers = #tpu.dot_dimension_numbers<[1], [0], [0], [1], [0, 0, 1, 1], [], []>} : vector<16x32xf32>, vector<32x16xf32>, vector<16x16xf32> -> vector<16x16xf32>
    %c0_75 = arith.constant 0 : index
    %c0_76 = arith.constant 0 : index
    %99 = vector.load %arg17[%c0_75, %c0_76] : memref<1x16xf32, #tpu.memory_space<vmem>>, vector<1x16xf32>
    %100 = vector.broadcast %99 : vector<1x16xf32> to vector<16x16xf32>
    %101 = arith.addf %98, %100 : vector<16x16xf32>
    %102 = arith.negf %101 : vector<16x16xf32>
    %103 = math.exp %102 : vector<16x16xf32>
    %cst_77 = arith.constant 1.000000e+00 : f32
    %104 = vector.broadcast %cst_77 : f32 to vector<16x16xf32>
    %105 = arith.addf %104, %103 : vector<16x16xf32>
    %106 = arith.divf %104, %105 : vector<16x16xf32>
    %c0_78 = arith.constant 0 : index
    %c0_79 = arith.constant 0 : index
    %107 = vector.load %arg19[%c0_78, %c0_79] : memref<16x16xf32, #tpu.memory_space<vmem>>, vector<16x16xf32>
    tpu.vector_store %arg19[%c0_78, %c0_79], %106 {strides = array<i32>} : memref<16x16xf32, #tpu.memory_space<vmem>>, vector<16x16xf32>,
    return
  }
  func.func @transform_0(%arg0: i32) -> (i32, i32) {
    %c0_i32 = arith.constant 0 : i32
    %c0_i32_0 = arith.constant 0 : i32
    return %arg0, %c0_i32 : i32, i32
  }
  func.func @transform_1(%arg0: i32) -> (i32, i32) {
    %c0_i32 = arith.constant 0 : i32
    %c0_i32_0 = arith.constant 0 : i32
    %c0_i32_1 = arith.constant 0 : i32
    return %c0_i32, %c0_i32_0 : i32, i32
  }
  func.func @transform_2(%arg0: i32) -> (i32, i32) {
    %c0_i32 = arith.constant 0 : i32
    %c0_i32_0 = arith.constant 0 : i32
    %c0_i32_1 = arith.constant 0 : i32
    return %c0_i32, %c0_i32_0 : i32, i32
  }
  func.func @transform_3(%arg0: i32) -> (i32, i32) {
    %c0_i32 = arith.constant 0 : i32
    %c0_i32_0 = arith.constant 0 : i32
    %c0_i32_1 = arith.constant 0 : i32
    return %c0_i32, %c0_i32_0 : i32, i32
  }
  func.func @transform_4(%arg0: i32) -> (i32, i32, i32) {
    %c0_i32 = arith.constant 0 : i32
    %c0_i32_0 = arith.constant 0 : i32
    %c0_i32_1 = arith.constant 0 : i32
    %c0_i32_2 = arith.constant 0 : i32
    return %c0_i32, %c0_i32_0, %c0_i32_1 : i32, i32, i32
  }
  func.func @transform_5(%arg0: i32) -> (i32, i32, i32) {
    %c0_i32 = arith.constant 0 : i32
    %c0_i32_0 = arith.constant 0 : i32
    %c0_i32_1 = arith.constant 0 : i32
    %c0_i32_2 = arith.constant 0 : i32
    return %c0_i32, %c0_i32_0, %c0_i32_1 : i32, i32, i32
  }
  func.func @transform_6(%arg0: i32) -> (i32, i32, i32) {
    %c0_i32 = arith.constant 0 : i32
    %c0_i32_0 = arith.constant 0 : i32
    %c0_i32_1 = arith.constant 0 : i32
    %c0_i32_2 = arith.constant 0 : i32
    return %c0_i32, %c0_i32_0, %c0_i32_1 : i32, i32, i32
  }
  func.func @transform_7(%arg0: i32) -> (i32, i32) {
    %c0_i32 = arith.constant 0 : i32
    %c0_i32_0 = arith.constant 0 : i32
    %c0_i32_1 = arith.constant 0 : i32
    return %c0_i32, %c0_i32_0 : i32, i32
  }
  func.func @transform_8(%arg0: i32) -> (i32, i32) {
    %c0_i32 = arith.constant 0 : i32
    %c0_i32_0 = arith.constant 0 : i32
    %c0_i32_1 = arith.constant 0 : i32
    return %c0_i32, %c0_i32_0 : i32, i32
  }
  func.func @transform_9(%arg0: i32) -> (i32, i32) {
    %c0_i32 = arith.constant 0 : i32
    %c0_i32_0 = arith.constant 0 : i32
    %c0_i32_1 = arith.constant 0 : i32
    return %c0_i32, %c0_i32_0 : i32, i32
  }
  func.func @transform_10(%arg0: i32) -> (i32, i32) {
    %c0_i32 = arith.constant 0 : i32
    %c0_i32_0 = arith.constant 0 : i32
    %c0_i32_1 = arith.constant 0 : i32
    return %c0_i32, %c0_i32_0 : i32, i32
  }
  func.func @transform_11(%arg0: i32) -> (i32, i32) {
    %c0_i32 = arith.constant 0 : i32
    %c0_i32_0 = arith.constant 0 : i32
    %c0_i32_1 = arith.constant 0 : i32
    return %c0_i32, %c0_i32_0 : i32, i32
  }
  func.func @transform_12(%arg0: i32) -> (i32, i32, i32) {
    %c0_i32 = arith.constant 0 : i32
    %c0_i32_0 = arith.constant 0 : i32
    %c0_i32_1 = arith.constant 0 : i32
    %c0_i32_2 = arith.constant 0 : i32
    return %c0_i32, %c0_i32_0, %c0_i32_1 : i32, i32, i32
  }
  func.func @transform_13(%arg0: i32) -> (i32, i32, i32) {
    %c0_i32 = arith.constant 0 : i32
    %c0_i32_0 = arith.constant 0 : i32
    %c0_i32_1 = arith.constant 0 : i32
    %c0_i32_2 = arith.constant 0 : i32
    return %c0_i32, %c0_i32_0, %c0_i32_1 : i32, i32, i32
  }
  func.func @transform_14(%arg0: i32) -> (i32, i32, i32) {
    %c0_i32 = arith.constant 0 : i32
    %c0_i32_0 = arith.constant 0 : i32
    %c0_i32_1 = arith.constant 0 : i32
    %c0_i32_2 = arith.constant 0 : i32
    return %c0_i32, %c0_i32_0, %c0_i32_1 : i32, i32, i32
  }
  func.func @transform_15(%arg0: i32) -> (i32, i32) {
    %c0_i32 = arith.constant 0 : i32
    %c0_i32_0 = arith.constant 0 : i32
    %c0_i32_1 = arith.constant 0 : i32
    return %c0_i32, %c0_i32_0 : i32, i32
  }
  func.func @transform_16(%arg0: i32) -> (i32, i32) {
    %c0_i32 = arith.constant 0 : i32
    %c0_i32_0 = arith.constant 0 : i32
    %c0_i32_1 = arith.constant 0 : i32
    return %c0_i32, %c0_i32_0 : i32, i32
  }
  func.func @transform_17(%arg0: i32) -> (i32, i32) {
    %c0_i32 = arith.constant 0 : i32
    %c0_i32_0 = arith.constant 0 : i32
    return %arg0, %c0_i32 : i32, i32
  }
  func.func @transform_18(%arg0: i32) -> (i32, i32) {
    %c0_i32 = arith.constant 0 : i32
    %c0_i32_0 = arith.constant 0 : i32
    return %arg0, %c0_i32 : i32, i32
  }
}

</mosaic_0001>

<llo_original>
// kernel: autoencoder_forward.1
$region0: #{autoencoder_forward.1}
  #allocation0 [shape = 'u32[]', space=smem, size = 0x4, offset = 0x4, fixed_abs, tag = 'smem constant byte address 0x4 - core index']
  #allocation1 [shape = 'u32[144,128]{1,0:T(1,128)}', space=vmem, size = 0x12000, scoped, tag = 'internal scratch']
  %s0 = inlined_call_operand.hbm [shape: f32[16,16], index: 0, kind: input, shape index: {}]
  %s1 = inlined_call_operand.vmem [shape: f32[16,32], index: 1, kind: input, shape index: {}]
  %s2 = inlined_call_operand.vmem [shape: f32[1,32], index: 2, kind: input, shape index: {}]
  %s3 = inlined_call_operand.vmem [shape: f32[1,32], index: 3, kind: input, shape index: {}]
  %s4 = inlined_call_operand.vmem [shape: f32[2,32,32], index: 4, kind: input, shape index: {}]
  %s5 = inlined_call_operand.vmem [shape: f32[2,1,32], index: 5, kind: input, shape index: {}]
  %s6 = inlined_call_operand.vmem [shape: f32[2,1,32], index: 6, kind: input, shape index: {}]
  %s7 = inlined_call_operand.vmem [shape: f32[32,8], index: 7, kind: input, shape index: {}]
  %s8 = inlined_call_operand.hbm [shape: f32[1,8], index: 8, kind: input, shape index: {}]
  %s9 = inlined_call_operand.hbm [shape: f32[8,32], index: 9, kind: input, shape index: {}]
  %s10 = inlined_call_operand.vmem [shape: f32[1,32], index: 10, kind: input, shape index: {}]
  %s11 = inlined_call_operand.vmem [shape: f32[1,32], index: 11, kind: input, shape index: {}]
  %s12 = inlined_call_operand.vmem [shape: f32[2,32,32], index: 12, kind: input, shape index: {}]
  %s13 = inlined_call_operand.vmem [shape: f32[2,1,32], index: 13, kind: input, shape index: {}]
  %s14 = inlined_call_operand.vmem [shape: f32[2,1,32], index: 14, kind: input, shape index: {}]
  %s15 = inlined_call_operand.vmem [shape: f32[32,16], index: 15, kind: input, shape index: {}]
  %s16 = inlined_call_operand.hbm [shape: f32[1,16], index: 16, kind: input, shape index: {}]
  %s17 = inlined_call_operand.vmem [shape: f32[16,8], index: 17, kind: output, shape index: {0}]
  %s18 = inlined_call_operand.hbm [shape: f32[16,16], index: 18, kind: output, shape index: {1}]
  %19 = xla_tuple %s17, %s18
  %s20 = sld [smem:[#allocation0]]
  $region102: #{autoencoder_forward.1} parent=0
    _
  %s22 = ssub.s32 1, %s20
  %s23 = scalar_select 0, %s22, %s20
  $region1: #{autoencoder_forward.1} parent=0
    #allocation2 [shape = 'u8[8192]{0}', space=vmem, size = 0x2000, scoped, tag = 'input window, operand 0, single buffered']
    #allocation3 [shape = 's32[1]{0}', space=sflag, size = 0x4, scoped, tag = 'scoped memory for autoencoder_forward.1']
    #allocation4 [shape = 's32[1]{0}', space=sflag, size = 0x4, scoped, tag = 'scoped memory for autoencoder_forward.1']
    #allocation5 [shape = 'u8[512]{0}', space=vmem, size = 0x400, scoped, tag = 'input window, operand 8, single buffered']
    #allocation6 [shape = 's32[1]{0}', space=sflag, size = 0x4, scoped, tag = 'scoped memory for autoencoder_forward.1']
    #allocation7 [shape = 'u8[4096]{0}', space=vmem, size = 0x1000, scoped, tag = 'input window, operand 9, single buffered']
    #allocation8 [shape = 'u8[512]{0}', space=vmem, size = 0x400, scoped, tag = 'input window, operand 16, single buffered']
    #allocation9 [shape = 's32[1]{0}', space=sflag, size = 0x4, scoped, tag = 'scoped memory for autoencoder_forward.1']
    #allocation10 [shape = 'u8[8192]{0}', space=vmem, size = 0x2000, scoped, tag = 'output window, operand 1, single buffered']
    %24 = vsyncpa [#allocation3], 0
    %25 = vsyncpa [#allocation6], 0
    %26 = vsyncpa [#allocation9], 0
    %27 = vsyncpa [#allocation4], 0
    // Predicated region
    $region2: #{autoencoder_forward.1} parent=1 // pred_check
      _
    $region3: #{autoencoder_forward.1} parent=1 // pred_check_branch
      %29 = sbr.rel (0) target = $region5
    $region4: #{autoencoder_forward.1} parent=1 // pred_region
      %s31 = ssub.s32 256, 256
      %32 = vsyncadd [#allocation3], %s31
      %s33 = sshll.u32 [#allocation2], 4
      %s34 = int_to_ptr.vmem [resolvable:$true] %s33
      %39 = dma.hbm_to_vmem [thread:$0]  %s0, 256, %s34, [#allocation3], 128, 128, 8
    $region5: #{autoencoder_forward.1} parent=1 // pred_fallthru
      _
    // Predicated region
    $region6: #{autoencoder_forward.1} parent=1 // pred_check
      _
    $region7: #{autoencoder_forward.1} parent=1 // pred_check_branch
      %41 = sbr.rel (0) target = $region9
    $region8: #{autoencoder_forward.1} parent=1 // pred_region
      _
    $region9: #{autoencoder_forward.1} parent=1 // pred_fallthru
      _
    // Predicated region
    $region10: #{autoencoder_forward.1} parent=1 // pred_check
      _
    $region11: #{autoencoder_forward.1} parent=1 // pred_check_branch
      %43 = sbr.rel (0) target = $region13
    $region12: #{autoencoder_forward.1} parent=1 // pred_region
      _
    $region13: #{autoencoder_forward.1} parent=1 // pred_fallthru
      _
    // Predicated region
    $region14: #{autoencoder_forward.1} parent=1 // pred_check
      _
    $region15: #{autoencoder_forward.1} parent=1 // pred_check_branch
      %45 = sbr.rel (0) target = $region17
    $region16: #{autoencoder_forward.1} parent=1 // pred_region
      _
    $region17: #{autoencoder_forward.1} parent=1 // pred_fallthru
      _
    // Predicated region
    $region18: #{autoencoder_forward.1} parent=1 // pred_check
      _
    $region19: #{autoencoder_forward.1} parent=1 // pred_check_branch
      %47 = sbr.rel (0) target = $region21
    $region20: #{autoencoder_forward.1} parent=1 // pred_region
      _
    $region21: #{autoencoder_forward.1} parent=1 // pred_fallthru
      _
    // Predicated region
    $region22: #{autoencoder_forward.1} parent=1 // pred_check
      _
    $region23: #{autoencoder_forward.1} parent=1 // pred_check_branch
      %49 = sbr.rel (0) target = $region25
    $region24: #{autoencoder_forward.1} parent=1 // pred_region
      _
    $region25: #{autoencoder_forward.1} parent=1 // pred_fallthru
      _
    // Predicated region
    $region26: #{autoencoder_forward.1} parent=1 // pred_check
      _
    $region27: #{autoencoder_forward.1} parent=1 // pred_check_branch
      %51 = sbr.rel (0) target = $region29
    $region28: #{autoencoder_forward.1} parent=1 // pred_region
      _
    $region29: #{autoencoder_forward.1} parent=1 // pred_fallthru
      _
    // Predicated region
    $region30: #{autoencoder_forward.1} parent=1 // pred_check
      _
    $region31: #{autoencoder_forward.1} parent=1 // pred_check_branch
      %53 = sbr.rel (0) target = $region33
    $region32: #{autoencoder_forward.1} parent=1 // pred_region
      _
    $region33: #{autoencoder_forward.1} parent=1 // pred_fallthru
      _
    // Predicated region
    $region34: #{autoencoder_forward.1} parent=1 // pred_check
      _
    $region35: #{autoencoder_forward.1} parent=1 // pred_check_branch
      %55 = sbr.rel (0) target = $region37
    $region36: #{autoencoder_forward.1} parent=1 // pred_region
      %s57 = ssub.s32 16, 16
      %58 = vsyncadd [#allocation6], %s57
      %s60 = sshll.u32 [#allocation5], 4
      %s61 = int_to_ptr.vmem [resolvable:$true] %s60
      %63 = dma.hbm_to_vmem [thread:$0]  %s8, 16, %s61, [#allocation6]
    $region37: #{autoencoder_forward.1} parent=1 // pred_fallthru
      _
    // Predicated region
    $region38: #{autoencoder_forward.1} parent=1 // pred_check
      _
    $region39: #{autoencoder_forward.1} parent=1 // pred_check_branch
      %65 = sbr.rel (0) target = $region41
    $region40: #{autoencoder_forward.1} parent=1 // pred_region
      %s67 = ssub.s32 128, 128
      %68 = vsyncadd [#allocation6], %s67
      %s70 = sshll.u32 [#allocation7], 4
      %s71 = int_to_ptr.vmem [resolvable:$true] %s70
      %73 = dma.hbm_to_vmem [thread:$0]  %s9, 128, %s71, [#allocation6]
    $region41: #{autoencoder_forward.1} parent=1 // pred_fallthru
      _
    // Predicated region
    $region42: #{autoencoder_forward.1} parent=1 // pred_check
      _
    $region43: #{autoencoder_forward.1} parent=1 // pred_check_branch
      %75 = sbr.rel (0) target = $region45
    $region44: #{autoencoder_forward.1} parent=1 // pred_region
      _
    $region45: #{autoencoder_forward.1} parent=1 // pred_fallthru
      _
    // Predicated region
    $region46: #{autoencoder_forward.1} parent=1 // pred_check
      _
    $region47: #{autoencoder_forward.1} parent=1 // pred_check_branch
      %77 = sbr.rel (0) target = $region49
    $region48: #{autoencoder_forward.1} parent=1 // pred_region
      _
    $region49: #{autoencoder_forward.1} parent=1 // pred_fallthru
      _
    // Predicated region
    $region50: #{autoencoder_forward.1} parent=1 // pred_check
      _
    $region51: #{autoencoder_forward.1} parent=1 // pred_check_branch
      %79 = sbr.rel (0) target = $region53
    $region52: #{autoencoder_forward.1} parent=1 // pred_region
      _
    $region53: #{autoencoder_forward.1} parent=1 // pred_fallthru
      _
    // Predicated region
    $region54: #{autoencoder_forward.1} parent=1 // pred_check
      _
    $region55: #{autoencoder_forward.1} parent=1 // pred_check_branch
      %81 = sbr.rel (0) target = $region57
    $region56: #{autoencoder_forward.1} parent=1 // pred_region
      _
    $region57: #{autoencoder_forward.1} parent=1 // pred_fallthru
      _
    // Predicated region
    $region58: #{autoencoder_forward.1} parent=1 // pred_check
      _
    $region59: #{autoencoder_forward.1} parent=1 // pred_check_branch
      %83 = sbr.rel (0) target = $region61
    $region60: #{autoencoder_forward.1} parent=1 // pred_region
      _
    $region61: #{autoencoder_forward.1} parent=1 // pred_fallthru
      _
    // Predicated region
    $region62: #{autoencoder_forward.1} parent=1 // pred_check
      _
    $region63: #{autoencoder_forward.1} parent=1 // pred_check_branch
      %85 = sbr.rel (0) target = $region65
    $region64: #{autoencoder_forward.1} parent=1 // pred_region
      _
    $region65: #{autoencoder_forward.1} parent=1 // pred_fallthru
      _
    // Predicated region
    $region66: #{autoencoder_forward.1} parent=1 // pred_check
      _
    $region67: #{autoencoder_forward.1} parent=1 // pred_check_branch
      %87 = sbr.rel (0) target = $region69
    $region68: #{autoencoder_forward.1} parent=1 // pred_region
      %s89 = ssub.s32 16, 16
      %90 = vsyncadd [#allocation9], %s89
      %s92 = sshll.u32 [#allocation8], 4
      %s93 = int_to_ptr.vmem [resolvable:$true] %s92
      %95 = dma.hbm_to_vmem [thread:$0]  %s16, 16, %s93, [#allocation9]
    $region69: #{autoencoder_forward.1} parent=1 // pred_fallthru
      _
    // Predicated region
    $region70: #{autoencoder_forward.1} parent=1 // pred_check
      _
    $region71: #{autoencoder_forward.1} parent=1 // pred_check_branch
      %97 = sbr.rel (0) target = $region73
    $region72: #{autoencoder_forward.1} parent=1 // pred_region
      %98 = dma.done [#allocation3], 256
    $region73: #{autoencoder_forward.1} parent=1 // pred_fallthru
      _
    // Predicated region
    $region74: #{autoencoder_forward.1} parent=1 // pred_check
      _
    $region75: #{autoencoder_forward.1} parent=1 // pred_check_branch
      %100 = sbr.rel (0) target = $region77
    $region76: #{autoencoder_forward.1} parent=1 // pred_region
      %101 = dma.done [#allocation6], 16
    $region77: #{autoencoder_forward.1} parent=1 // pred_fallthru
      _
    // Predicated region
    $region78: #{autoencoder_forward.1} parent=1 // pred_check
      _
    $region79: #{autoencoder_forward.1} parent=1 // pred_check_branch
      %103 = sbr.rel (0) target = $region81
    $region80: #{autoencoder_forward.1} parent=1 // pred_region
      %104 = dma.done [#allocation6], 128
    $region81: #{autoencoder_forward.1} parent=1 // pred_fallthru
      _
    // Predicated region
    $region82: #{autoencoder_forward.1} parent=1 // pred_check
      _
    $region83: #{autoencoder_forward.1} parent=1 // pred_check_branch
      %106 = sbr.rel (0) target = $region85
    $region84: #{autoencoder_forward.1} parent=1 // pred_region
      %107 = dma.done [#allocation9], 16
    $region85: #{autoencoder_forward.1} parent=1 // pred_fallthru
      _
    %v108 = vld [vmem:[#allocation2] sm:$0xff]
    %v109 = vld [vmem:[#allocation2 + $0x8] sm:$0xff]
    %v110 = vld [vmem:[%s1] sm:$0xff]
    %v111 = vld [vmem:[%s1 + $0x8] sm:$0xff]
    %vm112 = vcmask 130048
    %v114 = vsel %vm112, %v108, 0
    %v117 = vsel %vm112, %v109, 0
    %119 = vmatprep.subr.mxu0 0.0
    %120 = vmatpush1.msra.mxu0 0.0
    %121 = vmatprep.subr.mxu0 0.0
    %122 = vmatpush1.msra.mxu0 0.0
    %123 = vmatprep.subr.mxu0 0.0
    %124 = vmatpush1.msra.mxu0 0.0
    %125 = vmatprep.subr.mxu0 0.0
    %126 = vmatpush1.msra.mxu0 0.0
    %127 = vmatprep.subr.mxu0 0.0
    %128 = vmatpush1.msra.mxu0 0.0
    %129 = vmatprep.subr.mxu0 0.0
    %130 = vmatpush1.msra.mxu0 0.0
    %131 = vmatprep.subr.mxu0 0.0
    %132 = vmatpush1.msra.mxu0 0.0
    %133 = vmatprep.subr.mxu0 0.0
    %134 = vmatpush1.msra.mxu0 0.0
    %135 = vmatprep.subr.mxu0 0.0
    %136 = vmatpush1.msra.mxu0 0.0
    %137 = vmatprep.subr.mxu0 0.0
    %138 = vmatpush1.msra.mxu0 0.0
    %139 = vmatprep.subr.mxu0 0.0
    %140 = vmatpush1.msra.mxu0 0.0
    %141 = vmatprep.subr.mxu0 0.0
    %142 = vmatpush1.msra.mxu0 0.0
    %143 = vmatprep.subr.mxu0 0.0
    %144 = vmatpush1.msra.mxu0 0.0
    %145 = vmatprep.subr.mxu0 0.0
    %146 = vmatpush1.msra.mxu0 0.0
    %147 = vmatprep.subr.mxu0 0.0
    %148 = vmatpush1.msra.mxu0 %v111
    %149 = vmatprep.subr.mxu0 0.0
    %150 = vmatpush1.msra.mxu0 %v110
    %151 = vmatprep.subr.mxu0 0.0
    %152 = vmatpush2.msra.mxu0 0.0
    %153 = vmatprep.subr.mxu0 0.0
    %154 = vmatpush2.msra.mxu0 0.0
    %155 = vmatprep.subr.mxu0 0.0
    %156 = vmatpush2.msra.mxu0 0.0
    %157 = vmatprep.subr.mxu0 0.0
    %158 = vmatpush2.msra.mxu0 0.0
    %159 = vmatprep.subr.mxu0 0.0
    %160 = vmatpush2.msra.mxu0 0.0
    %161 = vmatprep.subr.mxu0 0.0
    %162 = vmatpush2.msra.mxu0 0.0
    %163 = vmatprep.subr.mxu0 0.0
    %164 = vmatpush2.msra.mxu0 0.0
    %165 = vmatprep.subr.mxu0 0.0
    %166 = vmatpush2.msra.mxu0 0.0
    %167 = vmatprep.subr.mxu0 0.0
    %168 = vmatpush2.msra.mxu0 0.0
    %169 = vmatprep.subr.mxu0 0.0
    %170 = vmatpush2.msra.mxu0 0.0
    %171 = vmatprep.subr.mxu0 0.0
    %172 = vmatpush2.msra.mxu0 0.0
    %173 = vmatprep.subr.mxu0 0.0
    %174 = vmatpush2.msra.mxu0 0.0
    %175 = vmatprep.subr.mxu0 0.0
    %176 = vmatpush2.msra.mxu0 0.0
    %177 = vmatprep.subr.mxu0 0.0
    %178 = vmatpush2.msra.mxu0 0.0
    %179 = vmatprep.subr.mxu0 0.0
    %180 = vmatpush2.msra.mxu0 0.0
    %181 = vmatprep.subr.mxu0 0.0
    %182 = vmatpush2.msra.mxu0 0.0
    %183 = vmatprep.mubr.f32.mxu0 0.0
    %184 = vmatmul.mubr.f32.gmra.mxu0 %v114
    %v185 = vpop.f32.mrf.mxu0
    %v186 = vadd.f32 0.0, %v185
    %v187 = vpop.f32.mrf.mxu0
    %188 = vmatprep.mubr.f32.mxu0 0.0
    %189 = vmatmul.mubr.f32.gmra.mxu0 %v117
    %v190 = vpop.f32.mrf.mxu0
    %v191 = vadd.f32 0.0, %v190
    %v192 = vpop.f32.mrf.mxu0
    %193 = vdwg.mxu0
    %v194 = vld [vmem:[%s2] sm:$0x1]
    %v196 = vlaneseq
    %v197 = vshrl.u32 %v196, 7
    %v198 = vsub.s32 0, %v197
    %v199 = vrot.slane %v194, %v198
    %v201 = vmul.f32 %v186, %v199
    %v202 = vmul.f32 %v191, %v199
    %v203 = vld [vmem:[%s3] sm:$0x1]
    %v205 = vlaneseq
    %v206 = vshrl.u32 %v205, 7
    %v207 = vsub.s32 0, %v206
    %v208 = vrot.slane %v203, %v207
    %v210 = vadd.f32 %v201, %v208
    %v211 = vadd.f32 %v202, %v208
    %vm212 = vcmp.ge.f32.partialorder %v210, 0.0
    %vm213 = vcmp.ge.f32.partialorder %v211, 0.0
    %v214 = vmul.f32 %v210, 0.1
    %v215 = vmul.f32 %v211, 0.1
    %v216 = vsel %vm212, %v210, %v214
    %v217 = vsel %vm213, %v211, %v215
    %v218 = vld [vmem:[%s4] sm:$0xff]
    %v219 = vld [vmem:[%s4 + $0x8] sm:$0xff]
    %v220 = vld [vmem:[%s4 + $0x10] sm:$0xff]
    %v221 = vld [vmem:[%s4 + $0x18] sm:$0xff]
    %vm222 = vcmask 261120
    %v224 = vsel %vm222, %v216, 0
    %v227 = vsel %vm222, %v217, 0
    %229 = vmatprep.subr.mxu0 0.0
    %230 = vmatpush1.msra.mxu0 0.0
    %231 = vmatprep.subr.mxu0 0.0
    %232 = vmatpush1.msra.mxu0 0.0
    %233 = vmatprep.subr.mxu0 0.0
    %234 = vmatpush1.msra.mxu0 0.0
    %235 = vmatprep.subr.mxu0 0.0
    %236 = vmatpush1.msra.mxu0 0.0
    %237 = vmatprep.subr.mxu0 0.0
    %238 = vmatpush1.msra.mxu0 0.0
    %239 = vmatprep.subr.mxu0 0.0
    %240 = vmatpush1.msra.mxu0 0.0
    %241 = vmatprep.subr.mxu0 0.0
    %242 = vmatpush1.msra.mxu0 0.0
    %243 = vmatprep.subr.mxu0 0.0
    %244 = vmatpush1.msra.mxu0 0.0
    %245 = vmatprep.subr.mxu0 0.0
    %246 = vmatpush1.msra.mxu0 0.0
    %247 = vmatprep.subr.mxu0 0.0
    %248 = vmatpush1.msra.mxu0 0.0
    %249 = vmatprep.subr.mxu0 0.0
    %250 = vmatpush1.msra.mxu0 0.0
    %251 = vmatprep.subr.mxu0 0.0
    %252 = vmatpush1.msra.mxu0 0.0
    %253 = vmatprep.subr.mxu0 0.0
    %254 = vmatpush1.msra.mxu0 %v221
    %255 = vmatprep.subr.mxu0 0.0
    %256 = vmatpush1.msra.mxu0 %v220
    %257 = vmatprep.subr.mxu0 0.0
    %258 = vmatpush1.msra.mxu0 %v219
    %259 = vmatprep.subr.mxu0 0.0
    %260 = vmatpush1.msra.mxu0 %v218
    %261 = vmatprep.subr.mxu0 0.0
    %262 = vmatpush2.msra.mxu0 0.0
    %263 = vmatprep.subr.mxu0 0.0
    %264 = vmatpush2.msra.mxu0 0.0
    %265 = vmatprep.subr.mxu0 0.0
    %266 = vmatpush2.msra.mxu0 0.0
    %267 = vmatprep.subr.mxu0 0.0
    %268 = vmatpush2.msra.mxu0 0.0
    %269 = vmatprep.subr.mxu0 0.0
    %270 = vmatpush2.msra.mxu0 0.0
    %271 = vmatprep.subr.mxu0 0.0
    %272 = vmatpush2.msra.mxu0 0.0
    %273 = vmatprep.subr.mxu0 0.0
    %274 = vmatpush2.msra.mxu0 0.0
    %275 = vmatprep.subr.mxu0 0.0
    %276 = vmatpush2.msra.mxu0 0.0
    %277 = vmatprep.subr.mxu0 0.0
    %278 = vmatpush2.msra.mxu0 0.0
    %279 = vmatprep.subr.mxu0 0.0
    %280 = vmatpush2.msra.mxu0 0.0
    %281 = vmatprep.subr.mxu0 0.0
    %282 = vmatpush2.msra.mxu0 0.0
    %283 = vmatprep.subr.mxu0 0.0
    %284 = vmatpush2.msra.mxu0 0.0
    %285 = vmatprep.subr.mxu0 0.0
    %286 = vmatpush2.msra.mxu0 0.0
    %287 = vmatprep.subr.mxu0 0.0
    %288 = vmatpush2.msra.mxu0 0.0
    %289 = vmatprep.subr.mxu0 0.0
    %290 = vmatpush2.msra.mxu0 0.0
    %291 = vmatprep.subr.mxu0 0.0
    %292 = vmatpush2.msra.mxu0 0.0
    %293 = vmatprep.mubr.f32.mxu0 0.0
    %294 = vmatmul.mubr.f32.gmra.mxu0 %v224
    %v295 = vpop.f32.mrf.mxu0
    %v296 = vadd.f32 0.0, %v295
    %v297 = vpop.f32.mrf.mxu0
    %298 = vmatprep.mubr.f32.mxu0 0.0
    %299 = vmatmul.mubr.f32.gmra.mxu0 %v227
    %v300 = vpop.f32.mrf.mxu0
    %v301 = vadd.f32 0.0, %v300
    %v302 = vpop.f32.mrf.mxu0
    %303 = vdwg.mxu0
    %v304 = vld [vmem:[%s5] sm:$0x1]
    %v306 = vlaneseq
    %v307 = vshrl.u32 %v306, 7
    %v308 = vsub.s32 0, %v307
    %v309 = vrot.slane %v304, %v308
    %v311 = vmul.f32 %v296, %v309
    %v312 = vmul.f32 %v301, %v309
    %v313 = vld [vmem:[%s6] sm:$0x1]
    %v315 = vlaneseq
    %v316 = vshrl.u32 %v315, 7
    %v317 = vsub.s32 0, %v316
    %v318 = vrot.slane %v313, %v317
    %v320 = vadd.f32 %v311, %v318
    %v321 = vadd.f32 %v312, %v318
    %vm322 = vcmp.ge.f32.partialorder %v320, 0.0
    %vm323 = vcmp.ge.f32.partialorder %v321, 0.0
    %v324 = vmul.f32 %v320, 0.1
    %v325 = vmul.f32 %v321, 0.1
    %v326 = vsel %vm322, %v320, %v324
    %v327 = vsel %vm323, %v321, %v325
    %s328 = scalar_lea.vmem %s4, 32
    %v329 = vld [vmem:[%s328] sm:$0xff]
    %v330 = vld [vmem:[%s328 + $0x8] sm:$0xff]
    %v331 = vld [vmem:[%s328 + $0x10] sm:$0xff]
    %v332 = vld [vmem:[%s328 + $0x18] sm:$0xff]
    %v334 = vsel %vm222, %v326, 0
    %v337 = vsel %vm222, %v327, 0
    %339 = vmatprep.subr.mxu0 0.0
    %340 = vmatpush1.msra.mxu0 0.0
    %341 = vmatprep.subr.mxu0 0.0
    %342 = vmatpush1.msra.mxu0 0.0
    %343 = vmatprep.subr.mxu0 0.0
    %344 = vmatpush1.msra.mxu0 0.0
    %345 = vmatprep.subr.mxu0 0.0
    %346 = vmatpush1.msra.mxu0 0.0
    %347 = vmatprep.subr.mxu0 0.0
    %348 = vmatpush1.msra.mxu0 0.0
    %349 = vmatprep.subr.mxu0 0.0
    %350 = vmatpush1.msra.mxu0 0.0
    %351 = vmatprep.subr.mxu0 0.0
    %352 = vmatpush1.msra.mxu0 0.0
    %353 = vmatprep.subr.mxu0 0.0
    %354 = vmatpush1.msra.mxu0 0.0
    %355 = vmatprep.subr.mxu0 0.0
    %356 = vmatpush1.msra.mxu0 0.0
    %357 = vmatprep.subr.mxu0 0.0
    %358 = vmatpush1.msra.mxu0 0.0
    %359 = vmatprep.subr.mxu0 0.0
    %360 = vmatpush1.msra.mxu0 0.0
    %361 = vmatprep.subr.mxu0 0.0
    %362 = vmatpush1.msra.mxu0 0.0
    %363 = vmatprep.subr.mxu0 0.0
    %364 = vmatpush1.msra.mxu0 %v332
    %365 = vmatprep.subr.mxu0 0.0
    %366 = vmatpush1.msra.mxu0 %v331
    %367 = vmatprep.subr.mxu0 0.0
    %368 = vmatpush1.msra.mxu0 %v330
    %369 = vmatprep.subr.mxu0 0.0
    %370 = vmatpush1.msra.mxu0 %v329
    %371 = vmatprep.subr.mxu0 0.0
    %372 = vmatpush2.msra.mxu0 0.0
    %373 = vmatprep.subr.mxu0 0.0
    %374 = vmatpush2.msra.mxu0 0.0
    %375 = vmatprep.subr.mxu0 0.0
    %376 = vmatpush2.msra.mxu0 0.0
    %377 = vmatprep.subr.mxu0 0.0
    %378 = vmatpush2.msra.mxu0 0.0
    %379 = vmatprep.subr.mxu0 0.0
    %380 = vmatpush2.msra.mxu0 0.0
    %381 = vmatprep.subr.mxu0 0.0
    %382 = vmatpush2.msra.mxu0 0.0
    %383 = vmatprep.subr.mxu0 0.0
    %384 = vmatpush2.msra.mxu0 0.0
    %385 = vmatprep.subr.mxu0 0.0
    %386 = vmatpush2.msra.mxu0 0.0
    %387 = vmatprep.subr.mxu0 0.0
    %388 = vmatpush2.msra.mxu0 0.0
    %389 = vmatprep.subr.mxu0 0.0
    %390 = vmatpush2.msra.mxu0 0.0
    %391 = vmatprep.subr.mxu0 0.0
    %392 = vmatpush2.msra.mxu0 0.0
    %393 = vmatprep.subr.mxu0 0.0
    %394 = vmatpush2.msra.mxu0 0.0
    %395 = vmatprep.subr.mxu0 0.0
    %396 = vmatpush2.msra.mxu0 0.0
    %397 = vmatprep.subr.mxu0 0.0
    %398 = vmatpush2.msra.mxu0 0.0
    %399 = vmatprep.subr.mxu0 0.0
    %400 = vmatpush2.msra.mxu0 0.0
    %401 = vmatprep.subr.mxu0 0.0
    %402 = vmatpush2.msra.mxu0 0.0
    %403 = vmatprep.mubr.f32.mxu0 0.0
    %404 = vmatmul.mubr.f32.gmra.mxu0 %v334
    %v405 = vpop.f32.mrf.mxu0
    %v406 = vadd.f32 0.0, %v405
    %v407 = vpop.f32.mrf.mxu0
    %408 = vmatprep.mubr.f32.mxu0 0.0
    %409 = vmatmul.mubr.f32.gmra.mxu0 %v337
    %v410 = vpop.f32.mrf.mxu0
    %v411 = vadd.f32 0.0, %v410
    %v412 = vpop.f32.mrf.mxu0
    %413 = vdwg.mxu0
    %s414 = scalar_lea.vmem %s5, 1
    %v415 = vld [vmem:[%s414] sm:$0x1]
    %v417 = vlaneseq
    %v418 = vshrl.u32 %v417, 7
    %v419 = vsub.s32 0, %v418
    %v420 = vrot.slane %v415, %v419
    %v422 = vmul.f32 %v406, %v420
    %v423 = vmul.f32 %v411, %v420
    %s424 = scalar_lea.vmem %s6, 1
    %v425 = vld [vmem:[%s424] sm:$0x1]
    %v427 = vlaneseq
    %v428 = vshrl.u32 %v427, 7
    %v429 = vsub.s32 0, %v428
    %v430 = vrot.slane %v425, %v429
    %v432 = vadd.f32 %v422, %v430
    %v433 = vadd.f32 %v423, %v430
    %vm434 = vcmp.ge.f32.partialorder %v432, 0.0
    %vm435 = vcmp.ge.f32.partialorder %v433, 0.0
    %v436 = vmul.f32 %v432, 0.1
    %v437 = vmul.f32 %v433, 0.1
    %v438 = vsel %vm434, %v432, %v436
    %v439 = vsel %vm435, %v433, %v437
    %v440 = vld [vmem:[%s7] sm:$0xff]
    %v441 = vld [vmem:[%s7 + $0x8] sm:$0xff]
    %v442 = vld [vmem:[%s7 + $0x10] sm:$0xff]
    %v443 = vld [vmem:[%s7 + $0x18] sm:$0xff]
    %v444 = vld [vmem:[#allocation5] sm:$0x1]
    %v446 = vlaneseq
    %v447 = vshrl.u32 %v446, 7
    %v448 = vsub.s32 0, %v447
    %v449 = vrot.slane %v444, %v448
    %v452 = vsel %vm222, %v438, 0
    %v455 = vsel %vm222, %v439, 0
    %457 = vmatprep.subr.mxu0 0.0
    %458 = vmatpush1.msra.mxu0 0.0
    %459 = vmatprep.subr.mxu0 0.0
    %460 = vmatpush1.msra.mxu0 0.0
    %461 = vmatprep.subr.mxu0 0.0
    %462 = vmatpush1.msra.mxu0 0.0
    %463 = vmatprep.subr.mxu0 0.0
    %464 = vmatpush1.msra.mxu0 0.0
    %465 = vmatprep.subr.mxu0 0.0
    %466 = vmatpush1.msra.mxu0 0.0
    %467 = vmatprep.subr.mxu0 0.0
    %468 = vmatpush1.msra.mxu0 0.0
    %469 = vmatprep.subr.mxu0 0.0
    %470 = vmatpush1.msra.mxu0 0.0
    %471 = vmatprep.subr.mxu0 0.0
    %472 = vmatpush1.msra.mxu0 0.0
    %473 = vmatprep.subr.mxu0 0.0
    %474 = vmatpush1.msra.mxu0 0.0
    %475 = vmatprep.subr.mxu0 0.0
    %476 = vmatpush1.msra.mxu0 0.0
    %477 = vmatprep.subr.mxu0 0.0
    %478 = vmatpush1.msra.mxu0 0.0
    %479 = vmatprep.subr.mxu0 0.0
    %480 = vmatpush1.msra.mxu0 0.0
    %481 = vmatprep.subr.mxu0 0.0
    %482 = vmatpush1.msra.mxu0 %v443
    %483 = vmatprep.subr.mxu0 0.0
    %484 = vmatpush1.msra.mxu0 %v442
    %485 = vmatprep.subr.mxu0 0.0
    %486 = vmatpush1.msra.mxu0 %v441
    %487 = vmatprep.subr.mxu0 0.0
    %488 = vmatpush1.msra.mxu0 %v440
    %489 = vmatprep.subr.mxu0 0.0
    %490 = vmatpush2.msra.mxu0 0.0
    %491 = vmatprep.subr.mxu0 0.0
    %492 = vmatpush2.msra.mxu0 0.0
    %493 = vmatprep.subr.mxu0 0.0
    %494 = vmatpush2.msra.mxu0 0.0
    %495 = vmatprep.subr.mxu0 0.0
    %496 = vmatpush2.msra.mxu0 0.0
    %497 = vmatprep.subr.mxu0 0.0
    %498 = vmatpush2.msra.mxu0 0.0
    %499 = vmatprep.subr.mxu0 0.0
    %500 = vmatpush2.msra.mxu0 0.0
    %501 = vmatprep.subr.mxu0 0.0
    %502 = vmatpush2.msra.mxu0 0.0
    %503 = vmatprep.subr.mxu0 0.0
    %504 = vmatpush2.msra.mxu0 0.0
    %505 = vmatprep.subr.mxu0 0.0
    %506 = vmatpush2.msra.mxu0 0.0
    %507 = vmatprep.subr.mxu0 0.0
    %508 = vmatpush2.msra.mxu0 0.0
    %509 = vmatprep.subr.mxu0 0.0
    %510 = vmatpush2.msra.mxu0 0.0
    %511 = vmatprep.subr.mxu0 0.0
    %512 = vmatpush2.msra.mxu0 0.0
    %513 = vmatprep.subr.mxu0 0.0
    %514 = vmatpush2.msra.mxu0 0.0
    %515 = vmatprep.subr.mxu0 0.0
    %516 = vmatpush2.msra.mxu0 0.0
    %517 = vmatprep.subr.mxu0 0.0
    %518 = vmatpush2.msra.mxu0 0.0
    %519 = vmatprep.subr.mxu0 0.0
    %520 = vmatpush2.msra.mxu0 0.0
    %521 = vmatprep.mubr.f32.mxu0 0.0
    %522 = vmatmul.mubr.f32.gmra.mxu0 %v452
    %v523 = vpop.f32.mrf.mxu0
    %v524 = vadd.f32 %v449, %v523
    %v525 = vpop.f32.mrf.mxu0
    %526 = vmatprep.mubr.f32.mxu0 0.0
    %527 = vmatmul.mubr.f32.gmra.mxu0 %v455
    %v528 = vpop.f32.mrf.mxu0
    %v529 = vadd.f32 %v449, %v528
    %v530 = vpop.f32.mrf.mxu0
    %531 = vdwg.mxu0
    %vm532 = vcmask 64512
    %533 = vst.msk [vmem:[%s17] sm:$0xff] %vm532, %v524
    %534 = vst.msk [vmem:[%s17 + $0x8] sm:$0xff] %vm532, %v529
    %v535 = vld [vmem:[#allocation7] sm:$0xff]
    %v537 = vsel %vm532, %v524, 0
    %v540 = vsel %vm532, %v529, 0
    %542 = vmatprep.subr.mxu0 0.0
    %543 = vmatpush1.msra.mxu0 0.0
    %544 = vmatprep.subr.mxu0 0.0
    %545 = vmatpush1.msra.mxu0 0.0
    %546 = vmatprep.subr.mxu0 0.0
    %547 = vmatpush1.msra.mxu0 0.0
    %548 = vmatprep.subr.mxu0 0.0
    %549 = vmatpush1.msra.mxu0 0.0
    %550 = vmatprep.subr.mxu0 0.0
    %551 = vmatpush1.msra.mxu0 0.0
    %552 = vmatprep.subr.mxu0 0.0
    %553 = vmatpush1.msra.mxu0 0.0
    %554 = vmatprep.subr.mxu0 0.0
    %555 = vmatpush1.msra.mxu0 0.0
    %556 = vmatprep.subr.mxu0 0.0
    %557 = vmatpush1.msra.mxu0 0.0
    %558 = vmatprep.subr.mxu0 0.0
    %559 = vmatpush1.msra.mxu0 0.0
    %560 = vmatprep.subr.mxu0 0.0
    %561 = vmatpush1.msra.mxu0 0.0
    %562 = vmatprep.subr.mxu0 0.0
    %563 = vmatpush1.msra.mxu0 0.0
    %564 = vmatprep.subr.mxu0 0.0
    %565 = vmatpush1.msra.mxu0 0.0
    %566 = vmatprep.subr.mxu0 0.0
    %567 = vmatpush1.msra.mxu0 0.0
    %568 = vmatprep.subr.mxu0 0.0
    %569 = vmatpush1.msra.mxu0 0.0
    %570 = vmatprep.subr.mxu0 0.0
    %571 = vmatpush1.msra.mxu0 0.0
    %572 = vmatprep.subr.mxu0 0.0
    %573 = vmatpush1.msra.mxu0 %v535
    %574 = vmatprep.subr.mxu0 0.0
    %575 = vmatpush2.msra.mxu0 0.0
    %576 = vmatprep.subr.mxu0 0.0
    %577 = vmatpush2.msra.mxu0 0.0
    %578 = vmatprep.subr.mxu0 0.0
    %579 = vmatpush2.msra.mxu0 0.0
    %580 = vmatprep.subr.mxu0 0.0
    %581 = vmatpush2.msra.mxu0 0.0
    %582 = vmatprep.subr.mxu0 0.0
    %583 = vmatpush2.msra.mxu0 0.0
    %584 = vmatprep.subr.mxu0 0.0
    %585 = vmatpush2.msra.mxu0 0.0
    %586 = vmatprep.subr.mxu0 0.0
    %587 = vmatpush2.msra.mxu0 0.0
    %588 = vmatprep.subr.mxu0 0.0
    %589 = vmatpush2.msra.mxu0 0.0
    %590 = vmatprep.subr.mxu0 0.0
    %591 = vmatpush2.msra.mxu0 0.0
    %592 = vmatprep.subr.mxu0 0.0
    %593 = vmatpush2.msra.mxu0 0.0
    %594 = vmatprep.subr.mxu0 0.0
    %595 = vmatpush2.msra.mxu0 0.0
    %596 = vmatprep.subr.mxu0 0.0
    %597 = vmatpush2.msra.mxu0 0.0
    %598 = vmatprep.subr.mxu0 0.0
    %599 = vmatpush2.msra.mxu0 0.0
    %600 = vmatprep.subr.mxu0 0.0
    %601 = vmatpush2.msra.mxu0 0.0
    %602 = vmatprep.subr.mxu0 0.0
    %603 = vmatpush2.msra.mxu0 0.0
    %604 = vmatprep.subr.mxu0 0.0
    %605 = vmatpush2.msra.mxu0 0.0
    %606 = vmatprep.mubr.f32.mxu0 0.0
    %607 = vmatmul.mubr.f32.gmra.mxu0 %v537
    %v608 = vpop.f32.mrf.mxu0
    %v609 = vadd.f32 0.0, %v608
    %v610 = vpop.f32.mrf.mxu0
    %611 = vmatprep.mubr.f32.mxu0 0.0
    %612 = vmatmul.mubr.f32.gmra.mxu0 %v540
    %v613 = vpop.f32.mrf.mxu0
    %v614 = vadd.f32 0.0, %v613
    %v615 = vpop.f32.mrf.mxu0
    %616 = vdwg.mxu0
    %v617 = vld [vmem:[%s10] sm:$0x1]
    %v619 = vlaneseq
    %v620 = vshrl.u32 %v619, 7
    %v621 = vsub.s32 0, %v620
    %v622 = vrot.slane %v617, %v621
    %v624 = vmul.f32 %v609, %v622
    %v625 = vmul.f32 %v614, %v622
    %v626 = vld [vmem:[%s11] sm:$0x1]
    %v628 = vlaneseq
    %v629 = vshrl.u32 %v628, 7
    %v630 = vsub.s32 0, %v629
    %v631 = vrot.slane %v626, %v630
    %v633 = vadd.f32 %v624, %v631
    %v634 = vadd.f32 %v625, %v631
    %vm635 = vcmp.ge.f32.partialorder %v633, 0.0
    %vm636 = vcmp.ge.f32.partialorder %v634, 0.0
    %v637 = vmul.f32 %v633, 0.1
    %v638 = vmul.f32 %v634, 0.1
    %v639 = vsel %vm635, %v633, %v637
    %v640 = vsel %vm636, %v634, %v638
    %v641 = vld [vmem:[%s12] sm:$0xff]
    %v642 = vld [vmem:[%s12 + $0x8] sm:$0xff]
    %v643 = vld [vmem:[%s12 + $0x10] sm:$0xff]
    %v644 = vld [vmem:[%s12 + $0x18] sm:$0xff]
    %v646 = vsel %vm222, %v639, 0
    %v649 = vsel %vm222, %v640, 0
    %651 = vmatprep.subr.mxu0 0.0
    %652 = vmatpush1.msra.mxu0 0.0
    %653 = vmatprep.subr.mxu0 0.0
    %654 = vmatpush1.msra.mxu0 0.0
    %655 = vmatprep.subr.mxu0 0.0
    %656 = vmatpush1.msra.mxu0 0.0
    %657 = vmatprep.subr.mxu0 0.0
    %658 = vmatpush1.msra.mxu0 0.0
    %659 = vmatprep.subr.mxu0 0.0
    %660 = vmatpush1.msra.mxu0 0.0
    %661 = vmatprep.subr.mxu0 0.0
    %662 = vmatpush1.msra.mxu0 0.0
    %663 = vmatprep.subr.mxu0 0.0
    %664 = vmatpush1.msra.mxu0 0.0
    %665 = vmatprep.subr.mxu0 0.0
    %666 = vmatpush1.msra.mxu0 0.0
    %667 = vmatprep.subr.mxu0 0.0
    %668 = vmatpush1.msra.mxu0 0.0
    %669 = vmatprep.subr.mxu0 0.0
    %670 = vmatpush1.msra.mxu0 0.0
    %671 = vmatprep.subr.mxu0 0.0
    %672 = vmatpush1.msra.mxu0 0.0
    %673 = vmatprep.subr.mxu0 0.0
    %674 = vmatpush1.msra.mxu0 0.0
    %675 = vmatprep.subr.mxu0 0.0
    %676 = vmatpush1.msra.mxu0 %v644
    %677 = vmatprep.subr.mxu0 0.0
    %678 = vmatpush1.msra.mxu0 %v643
    %679 = vmatprep.subr.mxu0 0.0
    %680 = vmatpush1.msra.mxu0 %v642
    %681 = vmatprep.subr.mxu0 0.0
    %682 = vmatpush1.msra.mxu0 %v641
    %683 = vmatprep.subr.mxu0 0.0
    %684 = vmatpush2.msra.mxu0 0.0
    %685 = vmatprep.subr.mxu0 0.0
    %686 = vmatpush2.msra.mxu0 0.0
    %687 = vmatprep.subr.mxu0 0.0
    %688 = vmatpush2.msra.mxu0 0.0
    %689 = vmatprep.subr.mxu0 0.0
    %690 = vmatpush2.msra.mxu0 0.0
    %691 = vmatprep.subr.mxu0 0.0
    %692 = vmatpush2.msra.mxu0 0.0
    %693 = vmatprep.subr.mxu0 0.0
    %694 = vmatpush2.msra.mxu0 0.0
    %695 = vmatprep.subr.mxu0 0.0
    %696 = vmatpush2.msra.mxu0 0.0
    %697 = vmatprep.subr.mxu0 0.0
    %698 = vmatpush2.msra.mxu0 0.0
    %699 = vmatprep.subr.mxu0 0.0
    %700 = vmatpush2.msra.mxu0 0.0
    %701 = vmatprep.subr.mxu0 0.0
    %702 = vmatpush2.msra.mxu0 0.0
    %703 = vmatprep.subr.mxu0 0.0
    %704 = vmatpush2.msra.mxu0 0.0
    %705 = vmatprep.subr.mxu0 0.0
    %706 = vmatpush2.msra.mxu0 0.0
    %707 = vmatprep.subr.mxu0 0.0
    %708 = vmatpush2.msra.mxu0 0.0
    %709 = vmatprep.subr.mxu0 0.0
    %710 = vmatpush2.msra.mxu0 0.0
    %711 = vmatprep.subr.mxu0 0.0
    %712 = vmatpush2.msra.mxu0 0.0
    %713 = vmatprep.subr.mxu0 0.0
    %714 = vmatpush2.msra.mxu0 0.0
    %715 = vmatprep.mubr.f32.mxu0 0.0
    %716 = vmatmul.mubr.f32.gmra.mxu0 %v646
    %v717 = vpop.f32.mrf.mxu0
    %v718 = vadd.f32 0.0, %v717
    %v719 = vpop.f32.mrf.mxu0
    %720 = vmatprep.mubr.f32.mxu0 0.0
    %721 = vmatmul.mubr.f32.gmra.mxu0 %v649
    %v722 = vpop.f32.mrf.mxu0
    %v723 = vadd.f32 0.0, %v722
    %v724 = vpop.f32.mrf.mxu0
    %725 = vdwg.mxu0
    %v726 = vld [vmem:[%s13] sm:$0x1]
    %v728 = vlaneseq
    %v729 = vshrl.u32 %v728, 7
    %v730 = vsub.s32 0, %v729
    %v731 = vrot.slane %v726, %v730
    %v733 = vmul.f32 %v718, %v731
    %v734 = vmul.f32 %v723, %v731
    %v735 = vld [vmem:[%s14] sm:$0x1]
    %v737 = vlaneseq
    %v738 = vshrl.u32 %v737, 7
    %v739 = vsub.s32 0, %v738
    %v740 = vrot.slane %v735, %v739
    %v742 = vadd.f32 %v733, %v740
    %v743 = vadd.f32 %v734, %v740
    %vm744 = vcmp.ge.f32.partialorder %v742, 0.0
    %vm745 = vcmp.ge.f32.partialorder %v743, 0.0
    %v746 = vmul.f32 %v742, 0.1
    %v747 = vmul.f32 %v743, 0.1
    %v748 = vsel %vm744, %v742, %v746
    %v749 = vsel %vm745, %v743, %v747
    %s750 = scalar_lea.vmem %s12, 32
    %v751 = vld [vmem:[%s750] sm:$0xff]
    %v752 = vld [vmem:[%s750 + $0x8] sm:$0xff]
    %v753 = vld [vmem:[%s750 + $0x10] sm:$0xff]
    %v754 = vld [vmem:[%s750 + $0x18] sm:$0xff]
    %v756 = vsel %vm222, %v748, 0
    %v759 = vsel %vm222, %v749, 0
    %761 = vmatprep.subr.mxu0 0.0
    %762 = vmatpush1.msra.mxu0 0.0
    %763 = vmatprep.subr.mxu0 0.0
    %764 = vmatpush1.msra.mxu0 0.0
    %765 = vmatprep.subr.mxu0 0.0
    %766 = vmatpush1.msra.mxu0 0.0
    %767 = vmatprep.subr.mxu0 0.0
    %768 = vmatpush1.msra.mxu0 0.0
    %769 = vmatprep.subr.mxu0 0.0
    %770 = vmatpush1.msra.mxu0 0.0
    %771 = vmatprep.subr.mxu0 0.0
    %772 = vmatpush1.msra.mxu0 0.0
    %773 = vmatprep.subr.mxu0 0.0
    %774 = vmatpush1.msra.mxu0 0.0
    %775 = vmatprep.subr.mxu0 0.0
    %776 = vmatpush1.msra.mxu0 0.0
    %777 = vmatprep.subr.mxu0 0.0
    %778 = vmatpush1.msra.mxu0 0.0
    %779 = vmatprep.subr.mxu0 0.0
    %780 = vmatpush1.msra.mxu0 0.0
    %781 = vmatprep.subr.mxu0 0.0
    %782 = vmatpush1.msra.mxu0 0.0
    %783 = vmatprep.subr.mxu0 0.0
    %784 = vmatpush1.msra.mxu0 0.0
    %785 = vmatprep.subr.mxu0 0.0
    %786 = vmatpush1.msra.mxu0 %v754
    %787 = vmatprep.subr.mxu0 0.0
    %788 = vmatpush1.msra.mxu0 %v753
    %789 = vmatprep.subr.mxu0 0.0
    %790 = vmatpush1.msra.mxu0 %v752
    %791 = vmatprep.subr.mxu0 0.0
    %792 = vmatpush1.msra.mxu0 %v751
    %793 = vmatprep.subr.mxu0 0.0
    %794 = vmatpush2.msra.mxu0 0.0
    %795 = vmatprep.subr.mxu0 0.0
    %796 = vmatpush2.msra.mxu0 0.0
    %797 = vmatprep.subr.mxu0 0.0
    %798 = vmatpush2.msra.mxu0 0.0
    %799 = vmatprep.subr.mxu0 0.0
    %800 = vmatpush2.msra.mxu0 0.0
    %801 = vmatprep.subr.mxu0 0.0
    %802 = vmatpush2.msra.mxu0 0.0
    %803 = vmatprep.subr.mxu0 0.0
    %804 = vmatpush2.msra.mxu0 0.0
    %805 = vmatprep.subr.mxu0 0.0
    %806 = vmatpush2.msra.mxu0 0.0
    %807 = vmatprep.subr.mxu0 0.0
    %808 = vmatpush2.msra.mxu0 0.0
    %809 = vmatprep.subr.mxu0 0.0
    %810 = vmatpush2.msra.mxu0 0.0
    %811 = vmatprep.subr.mxu0 0.0
    %812 = vmatpush2.msra.mxu0 0.0
    %813 = vmatprep.subr.mxu0 0.0
    %814 = vmatpush2.msra.mxu0 0.0
    %815 = vmatprep.subr.mxu0 0.0
    %816 = vmatpush2.msra.mxu0 0.0
    %817 = vmatprep.subr.mxu0 0.0
    %818 = vmatpush2.msra.mxu0 0.0
    %819 = vmatprep.subr.mxu0 0.0
    %820 = vmatpush2.msra.mxu0 0.0
    %821 = vmatprep.subr.mxu0 0.0
    %822 = vmatpush2.msra.mxu0 0.0
    %823 = vmatprep.subr.mxu0 0.0
    %824 = vmatpush2.msra.mxu0 0.0
    %825 = vmatprep.mubr.f32.mxu0 0.0
    %826 = vmatmul.mubr.f32.gmra.mxu0 %v756
    %v827 = vpop.f32.mrf.mxu0
    %v828 = vadd.f32 0.0, %v827
    %v829 = vpop.f32.mrf.mxu0
    %830 = vmatprep.mubr.f32.mxu0 0.0
    %831 = vmatmul.mubr.f32.gmra.mxu0 %v759
    %v832 = vpop.f32.mrf.mxu0
    %v833 = vadd.f32 0.0, %v832
    %v834 = vpop.f32.mrf.mxu0
    %835 = vdwg.mxu0
    %s836 = scalar_lea.vmem %s13, 1
    %v837 = vld [vmem:[%s836] sm:$0x1]
    %v839 = vlaneseq
    %v840 = vshrl.u32 %v839, 7
    %v841 = vsub.s32 0, %v840
    %v842 = vrot.slane %v837, %v841
    %v844 = vmul.f32 %v828, %v842
    %v845 = vmul.f32 %v833, %v842
    %s846 = scalar_lea.vmem %s14, 1
    %v847 = vld [vmem:[%s846] sm:$0x1]
    %v849 = vlaneseq
    %v850 = vshrl.u32 %v849, 7
    %v851 = vsub.s32 0, %v850
    %v852 = vrot.slane %v847, %v851
    %v854 = vadd.f32 %v844, %v852
    %v855 = vadd.f32 %v845, %v852
    %vm856 = vcmp.ge.f32.partialorder %v854, 0.0
    %vm857 = vcmp.ge.f32.partialorder %v855, 0.0
    %v858 = vmul.f32 %v854, 0.1
    %v859 = vmul.f32 %v855, 0.1
    %v860 = vsel %vm856, %v854, %v858
    %v861 = vsel %vm857, %v855, %v859
    %v862 = vld [vmem:[%s15] sm:$0xff]
    %v863 = vld [vmem:[%s15 + $0x8] sm:$0xff]
    %v864 = vld [vmem:[%s15 + $0x10] sm:$0xff]
    %v865 = vld [vmem:[%s15 + $0x18] sm:$0xff]
    %v866 = vld [vmem:[#allocation8] sm:$0x1]
    %v868 = vlaneseq
    %v869 = vshrl.u32 %v868, 7
    %v870 = vsub.s32 0, %v869
    %v871 = vrot.slane %v866, %v870
    %v874 = vsel %vm222, %v860, 0
    %v877 = vsel %vm222, %v861, 0
    %879 = vmatprep.subr.mxu0 0.0
    %880 = vmatpush1.msra.mxu0 0.0
    %881 = vmatprep.subr.mxu0 0.0
    %882 = vmatpush1.msra.mxu0 0.0
    %883 = vmatprep.subr.mxu0 0.0
    %884 = vmatpush1.msra.mxu0 0.0
    %885 = vmatprep.subr.mxu0 0.0
    %886 = vmatpush1.msra.mxu0 0.0
    %887 = vmatprep.subr.mxu0 0.0
    %888 = vmatpush1.msra.mxu0 0.0
    %889 = vmatprep.subr.mxu0 0.0
    %890 = vmatpush1.msra.mxu0 0.0
    %891 = vmatprep.subr.mxu0 0.0
    %892 = vmatpush1.msra.mxu0 0.0
    %893 = vmatprep.subr.mxu0 0.0
    %894 = vmatpush1.msra.mxu0 0.0
    %895 = vmatprep.subr.mxu0 0.0
    %896 = vmatpush1.msra.mxu0 0.0
    %897 = vmatprep.subr.mxu0 0.0
    %898 = vmatpush1.msra.mxu0 0.0
    %899 = vmatprep.subr.mxu0 0.0
    %900 = vmatpush1.msra.mxu0 0.0
    %901 = vmatprep.subr.mxu0 0.0
    %902 = vmatpush1.msra.mxu0 0.0
    %903 = vmatprep.subr.mxu0 0.0
    %904 = vmatpush1.msra.mxu0 %v865
    %905 = vmatprep.subr.mxu0 0.0
    %906 = vmatpush1.msra.mxu0 %v864
    %907 = vmatprep.subr.mxu0 0.0
    %908 = vmatpush1.msra.mxu0 %v863
    %909 = vmatprep.subr.mxu0 0.0
    %910 = vmatpush1.msra.mxu0 %v862
    %911 = vmatprep.subr.mxu0 0.0
    %912 = vmatpush2.msra.mxu0 0.0
    %913 = vmatprep.subr.mxu0 0.0
    %914 = vmatpush2.msra.mxu0 0.0
    %915 = vmatprep.subr.mxu0 0.0
    %916 = vmatpush2.msra.mxu0 0.0
    %917 = vmatprep.subr.mxu0 0.0
    %918 = vmatpush2.msra.mxu0 0.0
    %919 = vmatprep.subr.mxu0 0.0
    %920 = vmatpush2.msra.mxu0 0.0
    %921 = vmatprep.subr.mxu0 0.0
    %922 = vmatpush2.msra.mxu0 0.0
    %923 = vmatprep.subr.mxu0 0.0
    %924 = vmatpush2.msra.mxu0 0.0
    %925 = vmatprep.subr.mxu0 0.0
    %926 = vmatpush2.msra.mxu0 0.0
    %927 = vmatprep.subr.mxu0 0.0
    %928 = vmatpush2.msra.mxu0 0.0
    %929 = vmatprep.subr.mxu0 0.0
    %930 = vmatpush2.msra.mxu0 0.0
    %931 = vmatprep.subr.mxu0 0.0
    %932 = vmatpush2.msra.mxu0 0.0
    %933 = vmatprep.subr.mxu0 0.0
    %934 = vmatpush2.msra.mxu0 0.0
    %935 = vmatprep.subr.mxu0 0.0
    %936 = vmatpush2.msra.mxu0 0.0
    %937 = vmatprep.subr.mxu0 0.0
    %938 = vmatpush2.msra.mxu0 0.0
    %939 = vmatprep.subr.mxu0 0.0
    %940 = vmatpush2.msra.mxu0 0.0
    %941 = vmatprep.subr.mxu0 0.0
    %942 = vmatpush2.msra.mxu0 0.0
    %943 = vmatprep.mubr.f32.mxu0 0.0
    %944 = vmatmul.mubr.f32.gmra.mxu0 %v874
    %v945 = vpop.f32.mrf.mxu0
    %v946 = vadd.f32 %v871, %v945
    %v947 = vpop.f32.mrf.mxu0
    %948 = vmatprep.mubr.f32.mxu0 0.0
    %949 = vmatmul.mubr.f32.gmra.mxu0 %v877
    %v950 = vpop.f32.mrf.mxu0
    %v951 = vadd.f32 %v871, %v950
    %v952 = vpop.f32.mrf.mxu0
    %953 = vdwg.mxu0
    %v954 = vxor.u32 %v946, 2147483648
    %v955 = vxor.u32 %v951, 2147483648
    %v956 = vmul.f32 %v954, 1.442695
    %v957 = vpow.pop %v956
    %v958 = vmul.f32 %v955, 1.442695
    %v959 = vpow.pop %v958
    %v960 = vadd.f32 %v957, 1.0
    %v961 = vadd.f32 %v959, 1.0
    %v962 = vrcp.pop %v960
    %v963 = vmul.f32 1.0, %v962
    %v964 = vrcp.pop %v961
    %v965 = vmul.f32 1.0, %v964
    %966 = vst.msk [vmem:[#allocation10] sm:$0xff] %vm112, %v963
    %967 = vst.msk [vmem:[#allocation10 + $0x8] sm:$0xff] %vm112, %v965
    // Predicated region
    $region86: #{autoencoder_forward.1} parent=1 // pred_check
      _
    $region87: #{autoencoder_forward.1} parent=1 // pred_check_branch
      %969 = sbr.rel (0) target = $region89
    $region88: #{autoencoder_forward.1} parent=1 // pred_region
      _
    $region89: #{autoencoder_forward.1} parent=1 // pred_fallthru
      _
    // Predicated region
    $region90: #{autoencoder_forward.1} parent=1 // pred_check
      _
    $region91: #{autoencoder_forward.1} parent=1 // pred_check_branch
      %971 = sbr.rel (0) target = $region93
    $region92: #{autoencoder_forward.1} parent=1 // pred_region
      %s973 = ssub.s32 256, 256
      %974 = vsyncadd [#allocation4], %s973
      %s975 = sshll.u32 [#allocation10], 4
      %s976 = int_to_ptr.vmem [resolvable:$true] %s975
      %981 = dma.vmem_to_hbm [thread:$0]  %s976, 256, %s18, [#allocation4], 128, 128, 8
    $region93: #{autoencoder_forward.1} parent=1 // pred_fallthru
      _
    // Predicated region
    $region94: #{autoencoder_forward.1} parent=1 // pred_check
      _
    $region95: #{autoencoder_forward.1} parent=1 // pred_check_branch
      %983 = sbr.rel (0) target = $region97
    $region96: #{autoencoder_forward.1} parent=1 // pred_region
      _
    $region97: #{autoencoder_forward.1} parent=1 // pred_fallthru
      _
    // Predicated region
    $region98: #{autoencoder_forward.1} parent=1 // pred_check
      _
    $region99: #{autoencoder_forward.1} parent=1 // pred_check_branch
      %985 = sbr.rel (0) target = $region101
    $region100: #{autoencoder_forward.1} parent=1 // pred_region
      %986 = dma.done [#allocation4], 256
    $region101: #{autoencoder_forward.1} parent=1 // pred_fallthru
      _
    %987 = vsyncpa [#allocation3], 1
    %988 = vsyncpa [#allocation6], 1
    %989 = vsyncpa [#allocation9], 1
    %990 = vsyncpa [#allocation4], 1

</llo_original>
